<compile_context>
chip_gen: v7x
topology: tpu7x:2x2x1
jax: 0.10.0
libtpu: 0.0.40
codegen_flags: <defaults>
</compile_context>

<pallas_src>
import functools

import jax
import jax.numpy as jnp
from jax.experimental import pallas as pl
from jax.experimental.pallas import tpu as pltpu


def _round_up(v, m):
    return ((v + m - 1) // m) * m


# ---------------- chip detection (once, at import) ----------------

def _detect_chip():
    kind = ""
    try:
        kind = jax.devices()[0].device_kind.lower()
    except Exception:
        pass

    is_v4 = "v4" in kind
    is_v5 = "v5" in kind
    is_v6 = ("v6" in kind) or ("trillium" in kind)
    is_v7 = ("v7" in kind) or ("tpu7" in kind)

    # Defaults (conservative / v7x-like): 64 MiB VMEM, 1 TC, 256-row MXU.
    vmem = 64 << 20
    num_tc = 1
    mxu_rows = 256
    if is_v7:
        vmem, num_tc, mxu_rows = 64 << 20, 2, 256
    elif is_v6:
        vmem, num_tc, mxu_rows = 128 << 20, 1, 256
    elif is_v5 or is_v4:
        vmem, num_tc, mxu_rows = 128 << 20, 1, 128

    # Prefer the runtime-reported VMEM capacity when available & sane.
    try:
        info = pltpu.get_tpu_info()
        reported = getattr(info, "vmem_capacity_bytes", None)
        if reported is not None and (8 << 20) <= int(reported) <= (2 << 30):
            vmem = int(reported)
    except Exception:
        pass

    return {"vmem_bytes": int(vmem), "num_tc": num_tc, "mxu_rows": mxu_rows}


_CHIP = _detect_chip()


# ---------------- tile selection ----------------

def _choose_nk_tiles(N, K, in_bytes):
    """tn/tk depend only on (N, K, dtype, chip) so weight padding can be hoisted."""
    big = _CHIP["vmem_bytes"] >= (100 << 20)   # v5e / v6e class (128 MiB VMEM)
    cap_mn = 1024 if big else 512
    cap_k = 2048 if big else 1024
    budget = int(_CHIP["vmem_bytes"] * 0.6)

    tn = min(_round_up(N, 128), cap_mn)
    tk = min(_round_up(K, 128), cap_k)

    def _fits(tn_, tk_):
        tm_ = cap_mn                                   # worst-case tm
        fp = (2 * (tm_ * tk_ + tk_ * tn_) * in_bytes   # double-buffered x, w
              + 3 * tm_ * tn_ * 4                      # out (x2) + f32 scratch
              + 2 * tn_ * 4)                           # bias
        return fp <= budget

    while tk > 128 and not _fits(tn, tk):
        tk = max(128, _round_up(tk // 2, 128))
    while tn > 128 and not _fits(tn, tk):
        tn = max(128, _round_up(tn // 2, 128))
    return tn, tk, cap_mn


def _choose_tm(M, N, tn, in_bytes, cap_mn):
    # dtype-aware sublane multiple: (8,128) min tile for f32, (16,128) bf16,
    # (32,128) int8/fp8.
    sub = {4: 8, 2: 16, 1: 32}.get(in_bytes, 8)
    if M >= 128:
        # Keep every MXU pass full: native height is 128 (v5e) / 256 (v6e/v7x).
        tm = min(_round_up(M, _CHIP["mxu_rows"]), cap_mn)
    else:
        tm = _round_up(M, sub)

    # Megacore: only on chips with 2 TensorCores (v7x).  Prefer splitting M so
    # the output tile stays lane-wide.
    if _CHIP["num_tc"] >= 2:
        grid_m = _round_up(M, tm) // tm
        grid_n = _round_up(N, tn) // tn
        if grid_m * grid_n < 2 and tm >= 2 * sub:
            tm = _round_up(tm // 2, sub)
    return tm


# ---------------- kernels ----------------
# Single-k path (K fits one tile): direct write, no accumulator round-trips.

def _mm_bias_single(x_ref, w_ref, b_ref, o_ref):
    acc = jnp.dot(x_ref[...], w_ref[...], preferred_element_type=jnp.float32)
    o_ref[...] = (acc + b_ref[...]).astype(o_ref.dtype)


def _mm_nobias_single(x_ref, w_ref, o_ref):
    o_ref[...] = jnp.dot(x_ref[...], w_ref[...],
                         preferred_element_type=jnp.float32).astype(o_ref.dtype)


# Multi-k, f32 output: accumulate directly into o_ref (resident across k).

def _mm_bias_direct(x_ref, w_ref, b_ref, o_ref):
    k = pl.program_id(2)

    @pl.when(k == 0)
    def _():
        o_ref[...] = jnp.zeros_like(o_ref)

    o_ref[...] += jnp.dot(x_ref[...], w_ref[...],
                          preferred_element_type=jnp.float32)

    @pl.when(k == pl.num_programs(2) - 1)
    def _():
        # bias broadcast over rows (== bias.unsqueeze(0).expand_as(output))
        o_ref[...] = (o_ref[...] + b_ref[...]).astype(o_ref.dtype)


def _mm_nobias_direct(x_ref, w_ref, o_ref):
    k = pl.program_id(2)

    @pl.when(k == 0)
    def _():
        o_ref[...] = jnp.zeros_like(o_ref)

    o_ref[...] += jnp.dot(x_ref[...], w_ref[...],
                          preferred_element_type=jnp.float32)


# Multi-k, non-f32 output: accumulate in an f32 VMEM scratch, cast once.

def _mm_bias_scratch(x_ref, w_ref, b_ref, o_ref, acc_ref):
    k = pl.program_id(2)

    @pl.when(k == 0)
    def _():
        acc_ref[...] = jnp.zeros_like(acc_ref)

    acc_ref[...] += jnp.dot(x_ref[...], w_ref[...],
                            preferred_element_type=jnp.float32)

    @pl.when(k == pl.num_programs(2) - 1)
    def _():
        o_ref[...] = (acc_ref[...] + b_ref[...]).astype(o_ref.dtype)


def _mm_nobias_scratch(x_ref, w_ref, o_ref, acc_ref):
    k = pl.program_id(2)

    @pl.when(k == 0)
    def _():
        acc_ref[...] = jnp.zeros_like(acc_ref)

    acc_ref[...] += jnp.dot(x_ref[...], w_ref[...],
                            preferred_element_type=jnp.float32)

    @pl.when(k == pl.num_programs(2) - 1)
    def _():
        o_ref[...] = acc_ref[...].astype(o_ref.dtype)


# ---------------- pallas_call construction ----------------

def _linear_impl_core(xp, wp, b2d, tm, tn, tk, out_dtype):
    """xp: (Mp, Kp), wp: (Kp, Np), b2d: (1, Np) or None; all tile-aligned."""
    Mp, Kp = xp.shape
    _, Np = wp.shape
    grid_m, grid_n, grid_k = Mp // tm, Np // tn, Kp // tk

    in_bytes = jnp.dtype(xp.dtype).itemsize
    out_bytes = jnp.dtype(out_dtype).itemsize
    use_scratch = out_dtype != jnp.float32

    # Cost estimate reflecting actual tiled traffic (re-streaming included).
    bytes_accessed = (grid_n * Mp * Kp + grid_m * Kp * Np) * in_bytes \
        + Mp * Np * out_bytes
    if b2d is not None:
        bytes_accessed += grid_m * Np * jnp.dtype(b2d.dtype).itemsize
    cost = pl.CostEstimate(flops=2 * Mp * Np * Kp, transcendentals=0,
                           bytes_accessed=int(bytes_accessed))

    footprint = (2 * (tm * tk + tk * tn) * in_bytes
                 + 2 * tm * tn * out_bytes
                 + (tm * tn * 4 if (use_scratch and grid_k > 1) else 0)
                 + (2 * tn * jnp.dtype(b2d.dtype).itemsize if b2d is not None else 0))
    clamp = (96 << 20) if _CHIP["vmem_bytes"] >= (100 << 20) else (48 << 20)
    vmem_limit = min(max(int(footprint * 1.5), 32 << 20), clamp)

    cparams = pltpu.CompilerParams

    if grid_k == 1:
        # Single-k fast path: 2-D parallel grid, direct write, no scratch.
        grid = (grid_m, grid_n)
        dims = ("parallel", "parallel")
        x_spec = pl.BlockSpec((tm, tk), lambda i, j: (i, 0))
        w_spec = pl.BlockSpec((tk, tn), lambda i, j: (0, j))
        o_spec = pl.BlockSpec((tm, tn), lambda i, j: (i, j))
        scratch = []
        if b2d is not None:
            b_spec = pl.BlockSpec((1, tn), lambda i, j: (0, j))
            kernel, in_specs, args = _mm_bias_single, [x_spec, w_spec, b_spec], (xp, wp, b2d)
        else:
            kernel, in_specs, args = _mm_nobias_single, [x_spec, w_spec], (xp, wp)
    else:
        grid = (grid_m, grid_n, grid_k)
        dims = ("parallel", "parallel", "arbitrary")
        x_spec = pl.BlockSpec((tm, tk), lambda i, j, k: (i, k))
        w_spec = pl.BlockSpec((tk, tn), lambda i, j, k: (k, j))
        o_spec = pl.BlockSpec((tm, tn), lambda i, j, k: (i, j))
        scratch = [pltpu.VMEM((tm, tn), jnp.float32)] if use_scratch else []
        if b2d is not None:
            b_spec = pl.BlockSpec((1, tn), lambda i, j, k: (0, j))
            kernel = _mm_bias_scratch if use_scratch else _mm_bias_direct
            in_specs, args = [x_spec, w_spec, b_spec], (xp, wp, b2d)
        else:
            kernel = _mm_nobias_scratch if use_scratch else _mm_nobias_direct
            in_specs, args = [x_spec, w_spec], (xp, wp)

    return pl.pallas_call(
        kernel,
        out_shape=jax.ShapeDtypeStruct((Mp, Np), out_dtype),
        grid_spec=pltpu.PrefetchScalarGridSpec(
            num_scalar_prefetch=0,
            grid=grid,
            in_specs=in_specs,
            out_specs=o_spec,
            scratch_shapes=scratch,
        ),
        compiler_params=cparams(dimension_semantics=dims,
                                vmem_limit_bytes=vmem_limit),
        cost_estimate=cost,
    )(*args)


@functools.partial(jax.jit, static_argnames=("tm", "tn", "tk", "n_out"))
def _linear_jit(x, wp, b2d, *, tm, tn, tk, n_out):
    """x: (M, K) unpadded; wp: (Kp, Np) tile-aligned; b2d: (1, Np) or None."""
    M, K = x.shape
    Kp, Np = wp.shape
    Mp = _round_up(M, tm)
    out_dtype = jnp.result_type(x.dtype, wp.dtype)

    xp = x
    if Mp != M or Kp != K:
        xp = jnp.pad(x, ((0, Mp - M), (0, Kp - K)))

    out = _linear_impl_core(xp, wp, b2d, tm, tn, tk, out_dtype)
    return out[:M, :n_out]


# ---------------- public API ----------------

class PallasLinear:
    """Pallas equivalent of the custom torch Linear: y = x @ W + b.

    Weight/bias padding is done ONCE at construction (hoisted out of the
    per-call hot path); only x is padded per call.
    """

    def __init__(self, weight, bias=None):
        K, N = weight.shape
        self.in_features, self.out_features = K, N
        in_bytes = jnp.dtype(weight.dtype).itemsize
        self._tn, self._tk, self._cap_mn = _choose_nk_tiles(N, K, in_bytes)
        Kp, Np = _round_up(K, self._tk), _round_up(N, self._tn)
        self.weight = (weight if (Kp == K and Np == N)
                       else jnp.pad(weight, ((0, Kp - K), (0, Np - N))))
        if bias is not None:
            bp = bias if Np == N else jnp.pad(bias, (0, Np - N))
            self.bias = bp.reshape(1, Np)
        else:
            self.bias = None

    def __call__(self, x):
        assert x.shape[-1] == self.in_features, "in_features mismatch"
        in_bytes = jnp.dtype(x.dtype).itemsize
        tm = _choose_tm(x.shape[0], self.out_features, self._tn, in_bytes,
                        self._cap_mn)
        return _linear_jit(x, self.weight, self.bias,
                           tm=tm, tn=self._tn, tk=self._tk,
                           n_out=self.out_features)


def linear_forward(x, weight, bias=None):
    """Functional convenience wrapper (pads weight per call; prefer PallasLinear
    for repeated forwards with the same parameters)."""
    M, K = x.shape
    K2, N = weight.shape
    assert K == K2, "in_features mismatch"
    in_bytes = jnp.dtype(x.dtype).itemsize
    tn, tk, cap_mn = _choose_nk_tiles(N, K, in_bytes)
    tm = _choose_tm(M, N, tn, in_bytes, cap_mn)
    Kp, Np = _round_up(K, tk), _round_up(N, tn)
    wp = weight if (Kp == K and Np == N) else jnp.pad(
        weight, ((0, Kp - K), (0, Np - N)))
    b2d = None
    if bias is not None:
        bp = bias if Np == N else jnp.pad(bias, (0, Np - N))
        b2d = bp.reshape(1, Np)
    return _linear_jit(x, wp, b2d, tm=tm, tn=tn, tk=tk, n_out=N)


def init_linear_params(key, in_features, out_features, bias=True):
    """Deterministic init mirroring nn.init.uniform_(-0.1, 0.1)."""
    kw, kb = jax.random.split(key)
    weight = jax.random.uniform(
        kw, (in_features, out_features), jnp.float32, minval=-0.1, maxval=0.1)
    b = None
    if bias:
        b = jax.random.uniform(
            kb, (out_features,), jnp.float32, minval=-0.1, maxval=0.1)
    return weight, b


if __name__ == "__main__":
    in_features, out_features = 32, 64
    batch = 8

    key = jax.random.PRNGKey(0)
    kx, kp, k3, k4 = jax.random.split(key, 4)
    x = jax.random.normal(kx, (batch, in_features), jnp.float32)
    weight, bias = init_linear_params(kp, in_features, out_features, bias=True)

    # functional path (single-k fast path at these shapes)
    out = jax.block_until_ready(linear_forward(x, weight, bias))
    ref = x @ weight + bias[None, :]
    assert out.shape == (batch, out_features)
    assert jnp.allclose(out, ref, atol=1e-5, rtol=1e-5), "bias path mismatch"

    # no-bias path
    out_nb = jax.block_until_ready(linear_forward(x, weight, None))
    assert jnp.allclose(out_nb, x @ weight, atol=1e-5, rtol=1e-5), "no-bias mismatch"

    # module-style path with hoisted (pre-padded) parameters
    layer = PallasLinear(weight, bias)
    out_mod = jax.block_until_ready(layer(x))
    assert jnp.allclose(out_mod, ref, atol=1e-5, rtol=1e-5), "PallasLinear mismatch"

    # exercise the multi-k accumulation kernel at small scale (tk forced < K)
    K2 = 256
    xb = jax.random.normal(k3, (batch, K2), jnp.float32)
    wb = jax.random.uniform(k4, (K2, out_features), jnp.float32,
                            minval=-0.1, maxval=0.1)
    wbp = jnp.pad(wb, ((0, 0), (0, 128 - out_features)))   # Np = 128
    b2d = jnp.pad(bias, (0, 128 - out_features)).reshape(1, 128)
    out_mk = jax.block_until_ready(
        _linear_jit(xb, wbp, b2d, tm=8, tn=128, tk=128, n_out=out_features))
    ref_mk = xb @ wb + bias[None, :]
    assert jnp.allclose(out_mk, ref_mk, atol=1e-4, rtol=1e-5), "multi-k mismatch"

    print("KERNEL_OK")
</pallas_src>

<mosaic_0001>
module attributes {stable_mosaic.version = 11 : i64} {
  func.func @_mm_bias_single(%arg0: i32, %arg1: i32, %arg2: memref<8x128xf32, #tpu.memory_space<vmem>>, %arg3: memref<128x128xf32, #tpu.memory_space<vmem>>, %arg4: memref<1x128xf32, #tpu.memory_space<vmem>>, %arg5: memref<8x128xf32, #tpu.memory_space<vmem>>) attributes {dimension_semantics = [#tpu.dimension_semantics<parallel>, #tpu.dimension_semantics<parallel>], iteration_bounds = array<i64: 1, 1>, scalar_prefetch = 0 : i64, scratch_operands = 0 : i64, tpu.core_type = #tpu.core_type<tc>, window_params = [{transform_indices = @transform_0, window_bounds = array<i64: 8, 128>}, {transform_indices = @transform_1, window_bounds = array<i64: 128, 128>}, {transform_indices = @transform_2, window_bounds = array<i64: 1, 128>}, {transform_indices = @transform_3, window_bounds = array<i64: 8, 128>}]} {
    %c0 = arith.constant 0 : index
    %c0_0 = arith.constant 0 : index
    %0 = vector.load %arg2[%c0, %c0_0] : memref<8x128xf32, #tpu.memory_space<vmem>>, vector<8x128xf32>
    %c0_1 = arith.constant 0 : index
    %c0_2 = arith.constant 0 : index
    %1 = vector.load %arg3[%c0_1, %c0_2] : memref<128x128xf32, #tpu.memory_space<vmem>>, vector<128x128xf32>
    %cst = arith.constant dense<0.000000e+00> : vector<8x128xf32>
    %2 = tpu.matmul %0, %1, %cst {dimension_numbers = #tpu.dot_dimension_numbers<[1], [0], [0], [1], [0, 0, 1, 1], [], []>} : vector<8x128xf32>, vector<128x128xf32>, vector<8x128xf32> -> vector<8x128xf32>
    %c0_3 = arith.constant 0 : index
    %c0_4 = arith.constant 0 : index
    %3 = vector.load %arg4[%c0_3, %c0_4] : memref<1x128xf32, #tpu.memory_space<vmem>>, vector<1x128xf32>
    %4 = vector.broadcast %3 : vector<1x128xf32> to vector<8x128xf32>
    %5 = arith.addf %2, %4 : vector<8x128xf32>
    %c0_5 = arith.constant 0 : index
    %c0_6 = arith.constant 0 : index
    %6 = vector.load %arg5[%c0_5, %c0_6] : memref<8x128xf32, #tpu.memory_space<vmem>>, vector<8x128xf32>
    tpu.vector_store %arg5[%c0_5, %c0_6], %5 {strides = array<i32>} : memref<8x128xf32, #tpu.memory_space<vmem>>, vector<8x128xf32>,
    return
  }
  func.func @transform_0(%arg0: i32, %arg1: i32) -> (i32, i32) {
    %c0_i32 = arith.constant 0 : i32
    %c0_i32_0 = arith.constant 0 : i32
    return %arg0, %c0_i32 : i32, i32
  }
  func.func @transform_1(%arg0: i32, %arg1: i32) -> (i32, i32) {
    %c0_i32 = arith.constant 0 : i32
    %c0_i32_0 = arith.constant 0 : i32
    return %c0_i32, %arg1 : i32, i32
  }
  func.func @transform_2(%arg0: i32, %arg1: i32) -> (i32, i32) {
    %c0_i32 = arith.constant 0 : i32
    %c0_i32_0 = arith.constant 0 : i32
    return %c0_i32, %arg1 : i32, i32
  }
  func.func @transform_3(%arg0: i32, %arg1: i32) -> (i32, i32) {
    %c0_i32 = arith.constant 0 : i32
    return %arg0, %arg1 : i32, i32
  }
}

</mosaic_0001>

<llo_original>
// kernel: _linear_jit.1
$region0: #{_linear_jit.1}
  #allocation0 [shape = 'u32[]', space=smem, size = 0x4, offset = 0x4, fixed_abs, tag = 'smem constant byte address 0x4 - core index']
  #allocation1 [shape = 'u32[144,128]{1,0:T(1,128)}', space=vmem, size = 0x12000, scoped, tag = 'internal scratch']
  %s0 = inlined_call_operand.vmem [shape: f32[8,128], index: 0, kind: input, shape index: {}]
  %s1 = inlined_call_operand.hbm [shape: f32[128,128], index: 1, kind: input, shape index: {}]
  %s2 = inlined_call_operand.vmem [shape: f32[1,128], index: 2, kind: input, shape index: {}]
  %s3 = inlined_call_operand.hbm [shape: f32[8,128], index: 3, kind: output, shape index: {}]
  %s4 = sld [smem:[#allocation0]]
  $region26: #{_linear_jit.1} parent=0
    _
  %s6 = ssub.s32 1, %s4
  %s7 = scalar_select 0, %s6, %s4
  $region1: #{_linear_jit.1} parent=0
    #allocation2 [shape = 'u8[65536]{0}', space=vmem, size = 0x10000, scoped, tag = 'input window, operand 1, single buffered']
    #allocation3 [shape = 's32[1]{0}', space=sflag, size = 0x4, scoped, tag = 'scoped memory for _linear_jit.1']
    #allocation4 [shape = 's32[1]{0}', space=sflag, size = 0x4, scoped, tag = 'scoped memory for _linear_jit.1']
    #allocation5 [shape = 'u8[4096]{0}', space=vmem, size = 0x1000, scoped, tag = 'output window, operand 0, single buffered']
    %8 = vsyncpa [#allocation3], 0
    %9 = vsyncpa [#allocation4], 0
    // Predicated region
    $region2: #{_linear_jit.1} parent=1 // pred_check
      _
    $region3: #{_linear_jit.1} parent=1 // pred_check_branch
      %11 = sbr.rel (0) target = $region5
    $region4: #{_linear_jit.1} parent=1 // pred_region
      _
    $region5: #{_linear_jit.1} parent=1 // pred_fallthru
      _
    // Predicated region
    $region6: #{_linear_jit.1} parent=1 // pred_check
      _
    $region7: #{_linear_jit.1} parent=1 // pred_check_branch
      %13 = sbr.rel (0) target = $region9
    $region8: #{_linear_jit.1} parent=1 // pred_region
      %s15 = ssub.s32 2048, 2048
      %16 = vsyncadd [#allocation3], %s15
      %s17 = sshll.u32 [#allocation2], 4
      %s18 = int_to_ptr.vmem [resolvable:$true] %s17
      %23 = dma.hbm_to_vmem [thread:$0]  %s1, 2048, %s18, [#allocation3], 128, 128, 8
    $region9: #{_linear_jit.1} parent=1 // pred_fallthru
      _
    // Predicated region
    $region10: #{_linear_jit.1} parent=1 // pred_check
      _
    $region11: #{_linear_jit.1} parent=1 // pred_check_branch
      %25 = sbr.rel (0) target = $region13
    $region12: #{_linear_jit.1} parent=1 // pred_region
      _
    $region13: #{_linear_jit.1} parent=1 // pred_fallthru
      _
    // Predicated region
    $region14: #{_linear_jit.1} parent=1 // pred_check
      _
    $region15: #{_linear_jit.1} parent=1 // pred_check_branch
      %27 = sbr.rel (0) target = $region17
    $region16: #{_linear_jit.1} parent=1 // pred_region
      %28 = dma.done [#allocation3], 2048
    $region17: #{_linear_jit.1} parent=1 // pred_fallthru
      _
    %v29 = vld [vmem:[%s0] sm:$0xff]
    %v30 = vld [vmem:[#allocation2] sm:$0xff]
    %v31 = vld [vmem:[#allocation2 + $0x8] sm:$0xff]
    %v32 = vld [vmem:[#allocation2 + $0x10] sm:$0xff]
    %v33 = vld [vmem:[#allocation2 + $0x18] sm:$0xff]
    %v34 = vld [vmem:[#allocation2 + $0x20] sm:$0xff]
    %v35 = vld [vmem:[#allocation2 + $0x28] sm:$0xff]
    %v36 = vld [vmem:[#allocation2 + $0x30] sm:$0xff]
    %v37 = vld [vmem:[#allocation2 + $0x38] sm:$0xff]
    %v38 = vld [vmem:[#allocation2 + $0x40] sm:$0xff]
    %v39 = vld [vmem:[#allocation2 + $0x48] sm:$0xff]
    %v40 = vld [vmem:[#allocation2 + $0x50] sm:$0xff]
    %v41 = vld [vmem:[#allocation2 + $0x58] sm:$0xff]
    %v42 = vld [vmem:[#allocation2 + $0x60] sm:$0xff]
    %v43 = vld [vmem:[#allocation2 + $0x68] sm:$0xff]
    %v44 = vld [vmem:[#allocation2 + $0x70] sm:$0xff]
    %v45 = vld [vmem:[#allocation2 + $0x78] sm:$0xff]
    %v46 = vld [vmem:[%s2] sm:$0x1]
    %v48 = vlaneseq
    %v49 = vshrl.u32 %v48, 7
    %v50 = vsub.s32 0, %v49
    %v51 = vrot.slane %v46, %v50
    %53 = vmatprep.subr.mxu0 0.0
    %54 = vmatpush1.msra.mxu0 %v30
    %55 = vmatprep.subr.mxu0 0.0
    %56 = vmatpush1.msra.mxu0 %v31
    %57 = vmatprep.subr.mxu0 0.0
    %58 = vmatpush1.msra.mxu0 %v32
    %59 = vmatprep.subr.mxu0 0.0
    %60 = vmatpush1.msra.mxu0 %v33
    %61 = vmatprep.subr.mxu0 0.0
    %62 = vmatpush1.msra.mxu0 %v34
    %63 = vmatprep.subr.mxu0 0.0
    %64 = vmatpush1.msra.mxu0 %v35
    %65 = vmatprep.subr.mxu0 0.0
    %66 = vmatpush1.msra.mxu0 %v36
    %67 = vmatprep.subr.mxu0 0.0
    %68 = vmatpush1.msra.mxu0 %v37
    %69 = vmatprep.subr.mxu0 0.0
    %70 = vmatpush1.msra.mxu0 %v38
    %71 = vmatprep.subr.mxu0 0.0
    %72 = vmatpush1.msra.mxu0 %v39
    %73 = vmatprep.subr.mxu0 0.0
    %74 = vmatpush1.msra.mxu0 %v40
    %75 = vmatprep.subr.mxu0 0.0
    %76 = vmatpush1.msra.mxu0 %v41
    %77 = vmatprep.subr.mxu0 0.0
    %78 = vmatpush1.msra.mxu0 %v42
    %79 = vmatprep.subr.mxu0 0.0
    %80 = vmatpush1.msra.mxu0 %v43
    %81 = vmatprep.subr.mxu0 0.0
    %82 = vmatpush1.msra.mxu0 %v44
    %83 = vmatprep.subr.mxu0 0.0
    %84 = vmatpush1.msra.mxu0 %v45
    %85 = vmatprep.subr.mxu0 0.0
    %86 = vmatpush1.msra.mxu0 0.0
    %87 = vmatprep.subr.mxu0 0.0
    %88 = vmatpush1.msra.mxu0 0.0
    %89 = vmatprep.subr.mxu0 0.0
    %90 = vmatpush1.msra.mxu0 0.0
    %91 = vmatprep.subr.mxu0 0.0
    %92 = vmatpush1.msra.mxu0 0.0
    %93 = vmatprep.subr.mxu0 0.0
    %94 = vmatpush1.msra.mxu0 0.0
    %95 = vmatprep.subr.mxu0 0.0
    %96 = vmatpush1.msra.mxu0 0.0
    %97 = vmatprep.subr.mxu0 0.0
    %98 = vmatpush1.msra.mxu0 0.0
    %99 = vmatprep.subr.mxu0 0.0
    %100 = vmatpush1.msra.mxu0 0.0
    %101 = vmatprep.subr.mxu0 0.0
    %102 = vmatpush1.msra.mxu0 0.0
    %103 = vmatprep.subr.mxu0 0.0
    %104 = vmatpush1.msra.mxu0 0.0
    %105 = vmatprep.subr.mxu0 0.0
    %106 = vmatpush1.msra.mxu0 0.0
    %107 = vmatprep.subr.mxu0 0.0
    %108 = vmatpush1.msra.mxu0 0.0
    %109 = vmatprep.subr.mxu0 0.0
    %110 = vmatpush1.msra.mxu0 0.0
    %111 = vmatprep.subr.mxu0 0.0
    %112 = vmatpush1.msra.mxu0 0.0
    %113 = vmatprep.subr.mxu0 0.0
    %114 = vmatpush1.msra.mxu0 0.0
    %115 = vmatprep.subr.mxu0 0.0
    %116 = vmatpush1.msra.mxu0 0.0
    %117 = vmatprep.mubr.f32.mxu0 0.0
    %118 = vmatmul.mubr.f32.gmra.mrb[0].mxu0 %v29
    %v119 = vpop.f32.mrb[0].mxu0
    %v120 = vadd.f32 %v51, %v119
    %v121 = vpop.f32.mrb[0].mxu0
    %122 = vdwg.mxu0
    %123 = vst [vmem:[#allocation5] sm:$0xff] %v120
    // Predicated region
    $region18: #{_linear_jit.1} parent=1 // pred_check
      _
    $region19: #{_linear_jit.1} parent=1 // pred_check_branch
      %125 = sbr.rel (0) target = $region21
    $region20: #{_linear_jit.1} parent=1 // pred_region
      %s127 = ssub.s32 128, 128
      %128 = vsyncadd [#allocation4], %s127
      %s130 = sshll.u32 [#allocation5], 4
      %s131 = int_to_ptr.vmem [resolvable:$true] %s130
      %133 = dma.vmem_to_hbm [thread:$0]  %s131, 128, %s3, [#allocation4]
    $region21: #{_linear_jit.1} parent=1 // pred_fallthru
      _
    // Predicated region
    $region22: #{_linear_jit.1} parent=1 // pred_check
      _
    $region23: #{_linear_jit.1} parent=1 // pred_check_branch
      %135 = sbr.rel (0) target = $region25
    $region24: #{_linear_jit.1} parent=1 // pred_region
      %136 = dma.done [#allocation4], 128
    $region25: #{_linear_jit.1} parent=1 // pred_fallthru
      _
    %137 = vsyncpa [#allocation3], 1
    %138 = vsyncpa [#allocation4], 1

</llo_original>
